<compile_context>
chip_gen: v7x
topology: tpu7x:2x2x1
jax: 0.10.0
libtpu: 0.0.40
codegen_flags: <defaults>
</compile_context>

<pallas_src>
import functools
import math

import jax
import jax.numpy as jnp
import numpy as np
from jax.experimental import pallas as pl
from jax.experimental.pallas import tpu as pltpu

_SQRT2 = math.sqrt(2.0)
_SUPPORTED_ACTS = ('linear', 'relu', 'lrelu', 'tanh', 'sigmoid', 'swish')
# TODO(synk): bias_act 'elu'/'selu'/'softplus' variants are not wired up; we
# raise at construction time instead of silently falling back to linear.


def _round_up(x, m):
    return ((x + m - 1) // m) * m


def _largest_divisor_tile(total, base, cap):
    """Largest multiple of `base` that divides `total` and is <= cap.

    `total` must be a multiple of `base`; result >= base (cap >= base assumed).
    """
    units = total // base
    best = 1
    for d in range(1, units + 1):
        if units % d == 0 and d * base <= cap:
            best = d
    return best * base


def _apply_activation_f32(y, activation):
    """bias_act nonlinearity in f32.

    NOTE: the sqrt(2) default gains for relu/lrelu are pre-folded into the
    stored weight/bias (positive scale commutes with max / sign-select), so
    they do NOT appear here.
    """
    if activation == 'linear':
        return y
    if activation == 'relu':
        return jnp.maximum(y, 0.0)
    if activation == 'lrelu':
        return jnp.where(y >= 0, y, y * jnp.float32(0.2))
    if activation == 'tanh':
        return jnp.tanh(y)
    if activation == 'sigmoid':
        return pl.reciprocal(1.0 + jnp.exp(-y), approx=True)
    if activation == 'swish':
        return y * pl.reciprocal(1.0 + jnp.exp(-y), approx=True) * jnp.float32(_SQRT2)
    raise ValueError(f'unsupported activation: {activation!r}')


def _fc_bias_kernel(x_ref, w_ref, b_ref, o_ref, *, activation):
    # x_ref: [tm, K]  w_ref: [K, tn] (gains folded, pre-transposed)
    # b_ref: [1, tn]  (gains folded)   o_ref: [tm, tn]
    y = jnp.dot(x_ref[...], w_ref[...], preferred_element_type=jnp.float32)
    y = y + b_ref[...].astype(jnp.float32)
    y = _apply_activation_f32(y, activation)
    o_ref[...] = y.astype(o_ref.dtype)


def _fc_nobias_kernel(x_ref, w_ref, o_ref, *, activation):
    y = jnp.dot(x_ref[...], w_ref[...], preferred_element_type=jnp.float32)
    y = _apply_activation_f32(y, activation)
    o_ref[...] = y.astype(o_ref.dtype)


class FullyConnectedLayer:
    """JAX/Pallas port of training/networks_stylegan2.FullyConnectedLayer."""

    def __init__(self, in_features, out_features, bias=True, activation='linear',
                 lr_multiplier=1, bias_init=0, *, key=None, dtype=jnp.float32,
                 tile_m=512, tile_n=512):
        if activation not in _SUPPORTED_ACTS:
            raise ValueError(
                f'activation {activation!r} not supported '
                f'(supported: {_SUPPORTED_ACTS})')
        self.in_features = int(in_features)
        self.out_features = int(out_features)
        self.activation = activation
        self.weight_gain = float(lr_multiplier) / math.sqrt(in_features)
        self.bias_gain = float(lr_multiplier)
        self._dtype = dtype
        self._tile_m_cap = max(8, _round_up(int(tile_m), 8))
        self._tile_n_cap = max(128, _round_up(int(tile_n), 128))

        if key is None:
            key = jax.random.PRNGKey(0)
        # Canonical parameters, matching torch: weight [out, in], bias [out].
        self.weight = (jax.random.normal(key, (out_features, in_features),
                                         jnp.float32)
                       / lr_multiplier).astype(dtype)
        self.bias = (jnp.full((out_features,), np.float32(bias_init), dtype)
                     if bias else None)

        # N is padded only to the lane width (128); tiles divide it exactly.
        self._n_pad = _round_up(out_features, 128)

        # NOTE: folded params are derived once from self.weight / self.bias.
        # If the canonical params are updated (training), call _refold().
        self._refold()

    def _refold(self):
        """Fold gains (+ relu/lrelu sqrt(2) bias_act gain), transpose, pad."""
        n_pad = self._n_pad
        act_gain = _SQRT2 if self.activation in ('relu', 'lrelu') else 1.0
        w_gain = self.weight_gain * act_gain
        b_gain = self.bias_gain * act_gain

        w_eff_t = (self.weight.astype(jnp.float32) * jnp.float32(w_gain)).T
        w_eff_t = jnp.pad(w_eff_t, ((0, 0), (0, n_pad - self.out_features)))
        self._w_eff_t = w_eff_t.astype(self._dtype)          # [K, n_pad]

        if self.bias is not None:
            b_eff = self.bias.astype(jnp.float32) * jnp.float32(b_gain)
            b_eff = jnp.pad(b_eff, (0, n_pad - self.out_features))
            self._b_eff = b_eff.reshape(1, n_pad).astype(self._dtype)
        else:
            self._b_eff = None

    def __call__(self, x):
        assert x.ndim == 2 and x.shape[1] == self.in_features
        batch = x.shape[0]
        k = self.in_features
        n_pad = self._n_pad

        # ---- N tiling: exact 128-multiple divisor of n_pad (no overpad) ----
        tn = _largest_divisor_tile(n_pad, 128, self._tile_n_cap)
        n_tiles = n_pad // tn

        # ---- M tiling: pad batch only to a multiple of 8 ----
        m_pad8 = _round_up(max(batch, 1), 8)
        m_tiles = pl.cdiv(m_pad8, self._tile_m_cap)
        tm = _round_up(-(-m_pad8 // m_tiles), 8)
        m_pad = tm * m_tiles

        # ---- ensure >= 2 grid steps so both TCs get work (v7x/v4/v5p) ----
        if n_tiles * m_tiles == 1:
            if tn % 256 == 0:                      # prefer splitting N: weight
                tn //= 2                           # halves go to separate cores
                n_tiles = 2
            elif tm % 16 == 0:
                tm //= 2
                m_tiles = 2

        x_p = x if m_pad == batch else jnp.pad(x, ((0, m_pad - batch), (0, 0)))

        # Folded params cached in layer dtype; cast only if x dtype differs.
        w = self._w_eff_t
        if w.dtype != x.dtype:
            w = w.astype(x.dtype)
        b = self._b_eff
        if b is not None and b.dtype != x.dtype:
            b = b.astype(x.dtype)

        # Grid is (N outer, M inner): weight block index changes only on the
        # outer axis -> whole weight DMA'd from HBM exactly once in total.
        grid = (n_tiles, m_tiles)
        in_specs = [
            pl.BlockSpec((tm, k), lambda j, i: (i, 0)),   # x tile
            pl.BlockSpec((k, tn), lambda j, i: (0, j)),   # weight tile (resident over M)
        ]
        args = [x_p, w]
        if b is not None:
            in_specs.append(pl.BlockSpec((1, tn), lambda j, i: (0, j)))
            args.append(b)
            kernel = functools.partial(_fc_bias_kernel, activation=self.activation)
        else:
            kernel = functools.partial(_fc_nobias_kernel, activation=self.activation)

        itemsize = jnp.dtype(x.dtype).itemsize
        footprint = 2 * (tm * k + k * tn + tm * tn + tn) * itemsize
        vmem_limit = int(min(max(4 * footprint, 32 << 20), 64 << 20))

        out = pl.pallas_call(
            kernel,
            out_shape=jax.ShapeDtypeStruct((m_pad, n_pad), x.dtype),
            grid=grid,
            in_specs=in_specs,
            out_specs=pl.BlockSpec((tm, tn), lambda j, i: (i, j)),
            compiler_params=pltpu.CompilerParams(
                dimension_semantics=("parallel", "parallel"),
                vmem_limit_bytes=vmem_limit),
        )(*args)

        if m_pad != batch or n_pad != self.out_features:
            out = out[:batch, :self.out_features]
        return out


def _reference(x, layer: FullyConnectedLayer):
    """Pure-jnp reference following the torch forward exactly."""
    w = layer.weight.astype(x.dtype) * layer.weight_gain
    y = x @ w.T
    if layer.bias is not None:
        b = layer.bias.astype(x.dtype)
        if layer.bias_gain != 1:
            b = b * layer.bias_gain
        y = y + b
    act = layer.activation
    if act == 'linear':
        return y
    if act == 'relu':
        return jnp.maximum(y, 0.0) * _SQRT2
    if act == 'lrelu':
        return jnp.where(y >= 0, y, 0.2 * y) * _SQRT2
    if act == 'tanh':
        return jnp.tanh(y)
    if act == 'sigmoid':
        return jax.nn.sigmoid(y)
    if act == 'swish':
        return y * jax.nn.sigmoid(y) * _SQRT2
    raise ValueError(act)


if __name__ == "__main__":
    key = jax.random.PRNGKey(0)
    kx, kw1, kw2, kw3, kw4 = jax.random.split(key, 5)

    batch, in_features, out_features = 8, 32, 64
    x = jax.random.normal(kx, (batch, in_features), jnp.float32)

    # 1) linear activation with bias (addmm path)
    fc_lin = FullyConnectedLayer(in_features, out_features, bias=True,
                                 activation='linear', lr_multiplier=1,
                                 bias_init=0.1, key=kw1)
    y_lin = jax.block_until_ready(fc_lin(x))
    assert y_lin.shape == (batch, out_features)
    np.testing.assert_allclose(np.asarray(y_lin), np.asarray(_reference(x, fc_lin)),
                               rtol=1e-5, atol=1e-5)

    # 2) lrelu with lr_multiplier (mapping-network style; sqrt(2) gain folded)
    fc_lrelu = FullyConnectedLayer(in_features, out_features, bias=True,
                                   activation='lrelu', lr_multiplier=0.01,
                                   bias_init=0, key=kw2)
    y_lrelu = jax.block_until_ready(fc_lrelu(x))
    np.testing.assert_allclose(np.asarray(y_lrelu),
                               np.asarray(_reference(x, fc_lrelu)),
                               rtol=1e-5, atol=1e-5)

    # 3) no bias + non-multiple-of-8 batch (exercises padding + no-bias path)
    x_odd = jax.random.normal(kx, (5, in_features), jnp.float32)
    fc_nob = FullyConnectedLayer(in_features, out_features, bias=False,
                                 activation='linear', lr_multiplier=1,
                                 key=kw3)
    y_nob = jax.block_until_ready(fc_nob(x_odd))
    assert y_nob.shape == (5, out_features)
    np.testing.assert_allclose(np.asarray(y_nob),
                               np.asarray(_reference(x_odd, fc_nob)),
                               rtol=1e-5, atol=1e-5)

    # 4) 512x512 aligned case (pad-free / slice-free path, N split for 2 TCs)
    x_big = jax.random.normal(kx, (16, 512), jnp.float32)
    fc_big = FullyConnectedLayer(512, 512, bias=True, activation='lrelu',
                                 lr_multiplier=0.01, key=kw4)
    y_big = jax.block_until_ready(fc_big(x_big))
    np.testing.assert_allclose(np.asarray(y_big),
                               np.asarray(_reference(x_big, fc_big)),
                               rtol=1e-4, atol=1e-4)

    print("KERNEL_OK")
</pallas_src>

<mosaic_0001>
module attributes {stable_mosaic.version = 11 : i64} {
  func.func @_fc_bias_kernel(%arg0: i32, %arg1: i32, %arg2: memref<8x32xf32, #tpu.memory_space<vmem>>, %arg3: memref<32x128xf32, #tpu.memory_space<vmem>>, %arg4: memref<1x128xf32, #tpu.memory_space<vmem>>, %arg5: memref<8x128xf32, #tpu.memory_space<vmem>>) attributes {dimension_semantics = [#tpu.dimension_semantics<parallel>, #tpu.dimension_semantics<parallel>], iteration_bounds = array<i64: 1, 1>, scalar_prefetch = 0 : i64, scratch_operands = 0 : i64, tpu.core_type = #tpu.core_type<tc>, window_params = [{transform_indices = @transform_0, window_bounds = array<i64: 8, 32>}, {transform_indices = @transform_1, window_bounds = array<i64: 32, 128>}, {transform_indices = @transform_2, window_bounds = array<i64: 1, 128>}, {transform_indices = @transform_3, window_bounds = array<i64: 8, 128>}]} {
    %c0 = arith.constant 0 : index
    %c0_0 = arith.constant 0 : index
    %0 = vector.load %arg2[%c0, %c0_0] : memref<8x32xf32, #tpu.memory_space<vmem>>, vector<8x32xf32>
    %c0_1 = arith.constant 0 : index
    %c0_2 = arith.constant 0 : index
    %1 = vector.load %arg3[%c0_1, %c0_2] : memref<32x128xf32, #tpu.memory_space<vmem>>, vector<32x128xf32>
    %cst = arith.constant dense<0.000000e+00> : vector<8x128xf32>
    %2 = tpu.matmul %0, %1, %cst {dimension_numbers = #tpu.dot_dimension_numbers<[1], [0], [0], [1], [0, 0, 1, 1], [], []>} : vector<8x32xf32>, vector<32x128xf32>, vector<8x128xf32> -> vector<8x128xf32>
    %c0_3 = arith.constant 0 : index
    %c0_4 = arith.constant 0 : index
    %3 = vector.load %arg4[%c0_3, %c0_4] : memref<1x128xf32, #tpu.memory_space<vmem>>, vector<1x128xf32>
    %4 = vector.broadcast %3 : vector<1x128xf32> to vector<8x128xf32>
    %5 = arith.addf %2, %4 : vector<8x128xf32>
    %c0_5 = arith.constant 0 : index
    %c0_6 = arith.constant 0 : index
    %6 = vector.load %arg5[%c0_5, %c0_6] : memref<8x128xf32, #tpu.memory_space<vmem>>, vector<8x128xf32>
    tpu.vector_store %arg5[%c0_5, %c0_6], %5 {strides = array<i32>} : memref<8x128xf32, #tpu.memory_space<vmem>>, vector<8x128xf32>,
    return
  }
  func.func @transform_0(%arg0: i32, %arg1: i32) -> (i32, i32) {
    %c0_i32 = arith.constant 0 : i32
    %c0_i32_0 = arith.constant 0 : i32
    return %arg1, %c0_i32 : i32, i32
  }
  func.func @transform_1(%arg0: i32, %arg1: i32) -> (i32, i32) {
    %c0_i32 = arith.constant 0 : i32
    %c0_i32_0 = arith.constant 0 : i32
    return %c0_i32, %arg0 : i32, i32
  }
  func.func @transform_2(%arg0: i32, %arg1: i32) -> (i32, i32) {
    %c0_i32 = arith.constant 0 : i32
    %c0_i32_0 = arith.constant 0 : i32
    return %c0_i32, %arg0 : i32, i32
  }
  func.func @transform_3(%arg0: i32, %arg1: i32) -> (i32, i32) {
    %c0_i32 = arith.constant 0 : i32
    return %arg1, %arg0 : i32, i32
  }
}

</mosaic_0001>

<llo_original>
// kernel: tpu_custom_call.1
$region0: #{tpu_custom_call.1}
  #allocation0 [shape = 'u32[]', space=smem, size = 0x4, offset = 0x4, fixed_abs, tag = 'smem constant byte address 0x4 - core index']
  #allocation1 [shape = 'u32[144,128]{1,0:T(1,128)}', space=vmem, size = 0x12000, scoped, tag = 'internal scratch']
  %s0 = inlined_call_operand.hbm [shape: f32[8,32], index: 0, kind: input, shape index: {}]
  %s1 = inlined_call_operand.hbm [shape: f32[32,128], index: 1, kind: input, shape index: {}]
  %s2 = inlined_call_operand.vmem [shape: f32[1,128], index: 2, kind: input, shape index: {}]
  %s3 = inlined_call_operand.hbm [shape: f32[8,128], index: 3, kind: output, shape index: {}]
  %s4 = sld [smem:[#allocation0]]
  $region30: #{tpu_custom_call.1} parent=0
    _
  %s6 = ssub.s32 1, %s4
  %s7 = scalar_select 0, %s6, %s4
  $region1: #{tpu_custom_call.1} parent=0
    #allocation2 [shape = 'u8[4096]{0}', space=vmem, size = 0x1000, scoped, tag = 'input window, operand 0, single buffered']
    #allocation3 [shape = 's32[1]{0}', space=sflag, size = 0x4, scoped, tag = 'scoped memory for tpu_custom_call.1']
    #allocation4 [shape = 's32[1]{0}', space=sflag, size = 0x4, scoped, tag = 'scoped memory for tpu_custom_call.1']
    #allocation5 [shape = 'u8[16384]{0}', space=vmem, size = 0x4000, scoped, tag = 'input window, operand 1, single buffered']
    #allocation6 [shape = 's32[1]{0}', space=sflag, size = 0x4, scoped, tag = 'scoped memory for tpu_custom_call.1']
    #allocation7 [shape = 'u8[4096]{0}', space=vmem, size = 0x1000, scoped, tag = 'output window, operand 0, single buffered']
    %8 = vsyncpa [#allocation3], 0
    %9 = vsyncpa [#allocation6], 0
    %10 = vsyncpa [#allocation4], 0
    // Predicated region
    $region2: #{tpu_custom_call.1} parent=1 // pred_check
      _
    $region3: #{tpu_custom_call.1} parent=1 // pred_check_branch
      %12 = sbr.rel (0) target = $region5
    $region4: #{tpu_custom_call.1} parent=1 // pred_region
      %s14 = ssub.s32 128, 128
      %15 = vsyncadd [#allocation3], %s14
      %s17 = sshll.u32 [#allocation2], 4
      %s18 = int_to_ptr.vmem [resolvable:$true] %s17
      %20 = dma.hbm_to_vmem [thread:$0]  %s0, 128, %s18, [#allocation3]
    $region5: #{tpu_custom_call.1} parent=1 // pred_fallthru
      _
    // Predicated region
    $region6: #{tpu_custom_call.1} parent=1 // pred_check
      _
    $region7: #{tpu_custom_call.1} parent=1 // pred_check_branch
      %22 = sbr.rel (0) target = $region9
    $region8: #{tpu_custom_call.1} parent=1 // pred_region
      %s24 = ssub.s32 512, 512
      %25 = vsyncadd [#allocation6], %s24
      %s26 = sshll.u32 [#allocation5], 4
      %s27 = int_to_ptr.vmem [resolvable:$true] %s26
      %32 = dma.hbm_to_vmem [thread:$0]  %s1, 512, %s27, [#allocation6], 128, 128, 8
    $region9: #{tpu_custom_call.1} parent=1 // pred_fallthru
      _
    // Predicated region
    $region10: #{tpu_custom_call.1} parent=1 // pred_check
      _
    $region11: #{tpu_custom_call.1} parent=1 // pred_check_branch
      %34 = sbr.rel (0) target = $region13
    $region12: #{tpu_custom_call.1} parent=1 // pred_region
      _
    $region13: #{tpu_custom_call.1} parent=1 // pred_fallthru
      _
    // Predicated region
    $region14: #{tpu_custom_call.1} parent=1 // pred_check
      _
    $region15: #{tpu_custom_call.1} parent=1 // pred_check_branch
      %36 = sbr.rel (0) target = $region17
    $region16: #{tpu_custom_call.1} parent=1 // pred_region
      %37 = dma.done [#allocation3], 128
    $region17: #{tpu_custom_call.1} parent=1 // pred_fallthru
      _
    // Predicated region
    $region18: #{tpu_custom_call.1} parent=1 // pred_check
      _
    $region19: #{tpu_custom_call.1} parent=1 // pred_check_branch
      %39 = sbr.rel (0) target = $region21
    $region20: #{tpu_custom_call.1} parent=1 // pred_region
      %40 = dma.done [#allocation6], 512
    $region21: #{tpu_custom_call.1} parent=1 // pred_fallthru
      _
    %v41 = vld [vmem:[#allocation2] sm:$0xff]
    %v42 = vld [vmem:[#allocation5] sm:$0xff]
    %v43 = vld [vmem:[#allocation5 + $0x8] sm:$0xff]
    %v44 = vld [vmem:[#allocation5 + $0x10] sm:$0xff]
    %v45 = vld [vmem:[#allocation5 + $0x18] sm:$0xff]
    %v46 = vld [vmem:[%s2] sm:$0x1]
    %v48 = vlaneseq
    %v49 = vshrl.u32 %v48, 7
    %v50 = vsub.s32 0, %v49
    %v51 = vrot.slane %v46, %v50
    %vm53 = vcmask 261120
    %v55 = vsel %vm53, %v41, 0
    %57 = vmatprep.subr.mxu0 0.0
    %58 = vmatpush1.msra.mxu0 %v42
    %59 = vmatprep.subr.mxu0 0.0
    %60 = vmatpush1.msra.mxu0 %v43
    %61 = vmatprep.subr.mxu0 0.0
    %62 = vmatpush1.msra.mxu0 %v44
    %63 = vmatprep.subr.mxu0 0.0
    %64 = vmatpush1.msra.mxu0 %v45
    %65 = vmatprep.subr.mxu0 0.0
    %66 = vmatpush1.msra.mxu0 0.0
    %67 = vmatprep.subr.mxu0 0.0
    %68 = vmatpush1.msra.mxu0 0.0
    %69 = vmatprep.subr.mxu0 0.0
    %70 = vmatpush1.msra.mxu0 0.0
    %71 = vmatprep.subr.mxu0 0.0
    %72 = vmatpush1.msra.mxu0 0.0
    %73 = vmatprep.subr.mxu0 0.0
    %74 = vmatpush1.msra.mxu0 0.0
    %75 = vmatprep.subr.mxu0 0.0
    %76 = vmatpush1.msra.mxu0 0.0
    %77 = vmatprep.subr.mxu0 0.0
    %78 = vmatpush1.msra.mxu0 0.0
    %79 = vmatprep.subr.mxu0 0.0
    %80 = vmatpush1.msra.mxu0 0.0
    %81 = vmatprep.subr.mxu0 0.0
    %82 = vmatpush1.msra.mxu0 0.0
    %83 = vmatprep.subr.mxu0 0.0
    %84 = vmatpush1.msra.mxu0 0.0
    %85 = vmatprep.subr.mxu0 0.0
    %86 = vmatpush1.msra.mxu0 0.0
    %87 = vmatprep.subr.mxu0 0.0
    %88 = vmatpush1.msra.mxu0 0.0
    %89 = vmatprep.subr.mxu0 0.0
    %90 = vmatpush1.msra.mxu0 0.0
    %91 = vmatprep.subr.mxu0 0.0
    %92 = vmatpush1.msra.mxu0 0.0
    %93 = vmatprep.subr.mxu0 0.0
    %94 = vmatpush1.msra.mxu0 0.0
    %95 = vmatprep.subr.mxu0 0.0
    %96 = vmatpush1.msra.mxu0 0.0
    %97 = vmatprep.subr.mxu0 0.0
    %98 = vmatpush1.msra.mxu0 0.0
    %99 = vmatprep.subr.mxu0 0.0
    %100 = vmatpush1.msra.mxu0 0.0
    %101 = vmatprep.subr.mxu0 0.0
    %102 = vmatpush1.msra.mxu0 0.0
    %103 = vmatprep.subr.mxu0 0.0
    %104 = vmatpush1.msra.mxu0 0.0
    %105 = vmatprep.subr.mxu0 0.0
    %106 = vmatpush1.msra.mxu0 0.0
    %107 = vmatprep.subr.mxu0 0.0
    %108 = vmatpush1.msra.mxu0 0.0
    %109 = vmatprep.subr.mxu0 0.0
    %110 = vmatpush1.msra.mxu0 0.0
    %111 = vmatprep.subr.mxu0 0.0
    %112 = vmatpush1.msra.mxu0 0.0
    %113 = vmatprep.subr.mxu0 0.0
    %114 = vmatpush1.msra.mxu0 0.0
    %115 = vmatprep.subr.mxu0 0.0
    %116 = vmatpush1.msra.mxu0 0.0
    %117 = vmatprep.subr.mxu0 0.0
    %118 = vmatpush1.msra.mxu0 0.0
    %119 = vmatprep.subr.mxu0 0.0
    %120 = vmatpush1.msra.mxu0 0.0
    %121 = vmatprep.mubr.f32.mxu0 0.0
    %122 = vmatmul.mubr.f32.gmra.mrb[0].mxu0 %v55
    %v123 = vpop.f32.mrb[0].mxu0
    %v124 = vadd.f32 %v51, %v123
    %v125 = vpop.f32.mrb[0].mxu0
    %126 = vdwg.mxu0
    %127 = vst [vmem:[#allocation7] sm:$0xff] %v124
    // Predicated region
    $region22: #{tpu_custom_call.1} parent=1 // pred_check
      _
    $region23: #{tpu_custom_call.1} parent=1 // pred_check_branch
      %129 = sbr.rel (0) target = $region25
    $region24: #{tpu_custom_call.1} parent=1 // pred_region
      %s131 = ssub.s32 128, 128
      %132 = vsyncadd [#allocation4], %s131
      %s134 = sshll.u32 [#allocation7], 4
      %s135 = int_to_ptr.vmem [resolvable:$true] %s134
      %137 = dma.vmem_to_hbm [thread:$0]  %s135, 128, %s3, [#allocation4]
    $region25: #{tpu_custom_call.1} parent=1 // pred_fallthru
      _
    // Predicated region
    $region26: #{tpu_custom_call.1} parent=1 // pred_check
      _
    $region27: #{tpu_custom_call.1} parent=1 // pred_check_branch
      %139 = sbr.rel (0) target = $region29
    $region28: #{tpu_custom_call.1} parent=1 // pred_region
      %140 = dma.done [#allocation4], 128
    $region29: #{tpu_custom_call.1} parent=1 // pred_fallthru
      _
    %141 = vsyncpa [#allocation3], 1
    %142 = vsyncpa [#allocation6], 1
    %143 = vsyncpa [#allocation4], 1

</llo_original>
